<compile_context>
chip_gen: v6e
topology: v6e:2x2x1
jax: 0.10.0
libtpu: 0.0.40
codegen_flags: <defaults>
</compile_context>

<pallas_src>
import math

import jax
import jax.numpy as jnp
from jax.experimental import pallas as pl
from jax.experimental.pallas import tpu as pltpu

BN_EPS = 1e-5
INV_SQRT2 = 1.0 / math.sqrt(2.0)
LANE = 128


def _round_up(x, m):
    return (x + m - 1) // m * m


def mlp_kernel(x_ref, w1_ref, b1_ref, w2_ref, b2_ref, o_ref):
    # x_ref: (batch_tile, d_in) f32 -> bf16 cast in-kernel (no extra HBM pass).
    x_bf = x_ref[...].astype(jnp.bfloat16)

    # fc1 (+ folded BatchNorm), transposed: h^T = w1^T @ x^T, contracting d_in.
    # bf16 operands, f32 accumulation on the MXU; result is lane-dense (batch).
    h = jax.lax.dot_general(
        w1_ref[...], x_bf,
        dimension_numbers=(((1,), (1,)), ((), ())),
        preferred_element_type=jnp.float32)            # (h_pad, batch_tile)
    h = h + b1_ref[...]                                # (h_pad, 1) lane-broadcast

    # exact erf GELU (PyTorch default), f32 elementwise on the VPU.
    h = 0.5 * h * (1.0 + jax.lax.erf(h * INV_SQRT2))

    # dropout: identity in eval mode.

    # fc2, transposed: out^T = w2^T @ h^T (bf16 operands, f32 accumulation).
    out = jnp.dot(w2_ref[...], h.astype(jnp.bfloat16),
                  preferred_element_type=jnp.float32)  # (out_pad, batch_tile)
    o_ref[...] = out + b2_ref[...]


def mlp_classifier_forward(x, params, *, batch_tile=None):
    """x: (B, input_dim, 1) float32.  Returns (B, output_dim) float32 logits."""
    w1, b1, gamma, beta, mean, var, w2, b2 = params

    # mirror torch's x.squeeze(2): only squeezes when that dim is exactly 1
    x2d = jnp.squeeze(x, axis=2) if (x.ndim == 3 and x.shape[2] == 1) else x
    B, d_in = x2d.shape
    H = w1.shape[1]
    d_out = w2.shape[1]

    # ---- fold inference BatchNorm into fc1 (exact affine fold, in f32) ----
    scale = gamma * jax.lax.rsqrt(var + BN_EPS)        # (1, H)
    w1f = w1 * scale                                   # (d_in, H)
    b1f = (b1 - mean) * scale + beta                   # (1, H)

    # ---- transposed, zero-padded parameter layouts (tiny, one-time) ----
    # Sublane pads are multiples of 16 so both f32 and packed-bf16 layouts are
    # dense.  Zero padding keeps the math exact: padded hidden units have zero
    # weight and bias -> GELU(0)=0 -> zero contribution through zero-padded w2.
    h_pad = _round_up(H, 16)
    out_pad = _round_up(d_out, 16)
    w1T = jnp.zeros((h_pad, d_in), jnp.float32).at[:H, :].set(w1f.T)
    b1T = jnp.zeros((h_pad, 1), jnp.float32).at[:H, :].set(b1f.T)
    w2T = jnp.zeros((out_pad, h_pad), jnp.float32).at[:d_out, :H].set(w2.T)
    b2T = jnp.zeros((out_pad, 1), jnp.float32).at[:d_out, :].set(b2.T)
    w1T = w1T.astype(jnp.bfloat16)
    w2T = w2T.astype(jnp.bfloat16)

    # ---- generation-aware VMEM budget (v5e/v6e: 128 MiB, v7x: 64 MiB) ----
    try:
        vmem_cap = int(pltpu.get_tpu_info().vmem_capacity_bytes)
    except Exception:
        vmem_cap = 0
    if vmem_cap <= 0:
        vmem_cap = 64 * 1024 * 1024                    # conservative (v7x) default
    vmem_limit = min(64 * 1024 * 1024, (vmem_cap * 3) // 4)

    resident = w1T.size * 2 + w2T.size * 2 + b1T.size * 4 + b2T.size * 4
    if batch_tile is None:
        # streamed per batch row: double-buffered f32 x block + double-buffered
        # f32 out^T block + f32 h^T intermediate (+ slack for GELU temporaries).
        per_row = 2 * d_in * 4 + 2 * out_pad * 4 + 3 * h_pad * 4
        budget = max(vmem_limit - 2 * resident - 4 * 1024 * 1024, 1024 * 1024)
        batch_tile = (budget // per_row) // LANE * LANE
        # keep >= 2 grid steps for large batches so both v7x TensorCores get
        # work, and never tile past the (lane-rounded) batch itself.
        two_core_cap = _round_up(pl.cdiv(B, 2), LANE)
        batch_tile = max(LANE, min(batch_tile, 2048, two_core_cap,
                                   _round_up(B, LANE)))
    else:
        batch_tile = max(LANE, _round_up(batch_tile, LANE))

    n_tiles = pl.cdiv(B, batch_tile)
    b_out = n_tiles * batch_tile        # padded output batch dim -> dense stores

    cost = pl.CostEstimate(
        flops=2 * b_out * (d_in * h_pad + h_pad * out_pad),
        transcendentals=b_out * h_pad,
        bytes_accessed=B * d_in * 4 + resident + b_out * out_pad * 4,
    )

    def run(pad_input, single_buffer):
        if pad_input:
            # fallback only: costs one extra HBM pass over x
            xp = jnp.zeros((b_out, d_in), x2d.dtype).at[:B, :].set(x2d)
        else:
            xp = x2d                     # ragged last block; OOB lanes discarded
        if single_buffer:
            def wspec(shape):
                return pl.BlockSpec(shape, lambda i: (0, 0),
                                    pipeline_mode=pl.Buffered(1))
        else:
            def wspec(shape):
                return pl.BlockSpec(shape, lambda i: (0, 0))
        return pl.pallas_call(
            mlp_kernel,
            out_shape=jax.ShapeDtypeStruct((out_pad, b_out), jnp.float32),
            grid=(n_tiles,),
            in_specs=[
                pl.BlockSpec((batch_tile, d_in), lambda i: (i, 0)),  # x tile
                wspec((h_pad, d_in)),                                # w1^T resident
                wspec((h_pad, 1)),                                   # b1   resident
                wspec((out_pad, h_pad)),                             # w2^T resident
                wspec((out_pad, 1)),                                 # b2   resident
            ],
            out_specs=pl.BlockSpec((out_pad, batch_tile), lambda i: (0, i)),
            compiler_params=pltpu.CompilerParams(
                dimension_semantics=("parallel",),   # batch tiles independent
                vmem_limit_bytes=vmem_limit,
            ),
            cost_estimate=cost,
        )(xp, w1T, b1T, w2T, b2T)

    try:
        out_t = run(pad_input=False, single_buffer=True)
    except Exception:
        # Conservative fallback for Pallas versions without pipeline_mode /
        # ragged input blocks: pad batch in the wrapper, default buffering.
        out_t = run(pad_input=True, single_buffer=False)

    # (out_pad, b_out) -> (B, d_out): tiny slice + transpose in XLA.
    return out_t[:d_out, :B].T


def init_params(key, input_dim, hidden_dim, output_dim,
                last_weight_zero=True, random_bn=False):
    """Init matching the module's parameter shapes (PyTorch-style bounds)."""
    k1, k2, k3, k4, k5, k6, k7, k8 = jax.random.split(key, 8)
    bound1 = 1.0 / math.sqrt(input_dim)
    w1 = jax.random.uniform(k1, (input_dim, hidden_dim), jnp.float32,
                            -bound1, bound1)            # fc1.weight^T
    b1 = jax.random.uniform(k2, (1, hidden_dim), jnp.float32, -bound1, bound1)

    if random_bn:  # emulate a trained BatchNorm state to exercise the fold
        gamma = jax.random.uniform(k5, (1, hidden_dim), jnp.float32, 0.5, 1.5)
        beta = 0.2 * jax.random.normal(k6, (1, hidden_dim), jnp.float32)
        mean = 0.2 * jax.random.normal(k7, (1, hidden_dim), jnp.float32)
        var = jax.random.uniform(k8, (1, hidden_dim), jnp.float32, 0.5, 1.5)
    else:          # PyTorch defaults
        gamma = jnp.ones((1, hidden_dim), jnp.float32)
        beta = jnp.zeros((1, hidden_dim), jnp.float32)
        mean = jnp.zeros((1, hidden_dim), jnp.float32)
        var = jnp.ones((1, hidden_dim), jnp.float32)

    bound2 = 1.0 / math.sqrt(hidden_dim)
    if last_weight_zero:
        w2 = jnp.zeros((hidden_dim, output_dim), jnp.float32)  # fc2.weight^T
    else:
        w2 = jax.random.uniform(k3, (hidden_dim, output_dim), jnp.float32,
                                -bound2, bound2)
    b2 = jax.random.uniform(k4, (1, output_dim), jnp.float32, -bound2, bound2)
    return (w1, b1, gamma, beta, mean, var, w2, b2)


def reference_forward(x, params):
    """Pure-JAX f32 reference (module semantics) for correctness checks."""
    w1, b1, gamma, beta, mean, var, w2, b2 = params
    h = jnp.squeeze(x, axis=2) @ w1 + b1
    h = (h - mean) * jax.lax.rsqrt(var + BN_EPS) * gamma + beta
    h = 0.5 * h * (1.0 + jax.lax.erf(h * INV_SQRT2))
    return h @ w2 + b2


if __name__ == "__main__":
    key = jax.random.PRNGKey(0)
    kx, kp1, kp2 = jax.random.split(key, 3)

    batch, input_dim, hidden_dim, output_dim = 8, 16, 32, 4
    x = jax.random.normal(kx, (batch, input_dim, 1), jnp.float32)

    # 1) module defaults: lastWeightZero=True, fresh BatchNorm stats
    params = init_params(kp1, input_dim, hidden_dim, output_dim,
                         last_weight_zero=True)
    out = jax.block_until_ready(mlp_classifier_forward(x, params))
    ref = reference_forward(x, params)
    assert out.shape == (batch, output_dim)
    assert jnp.allclose(out, ref, atol=1e-4, rtol=1e-4)

    # 2) non-trivial case: nonzero fc2 weight + "trained" BN stats
    #    (bf16 MXU operands with f32 accumulation -> relaxed tolerance)
    params2 = init_params(kp2, input_dim, hidden_dim, output_dim,
                          last_weight_zero=False, random_bn=True)
    out2 = jax.block_until_ready(mlp_classifier_forward(x, params2))
    ref2 = reference_forward(x, params2)
    assert out2.shape == (batch, output_dim)
    assert jnp.allclose(out2, ref2, atol=2e-2, rtol=2e-2)

    print("KERNEL_OK")
</pallas_src>

<mosaic_0001>
module attributes {stable_mosaic.version = 11 : i64} {
  func.func @mlp_kernel(%arg0: i32, %arg1: memref<128x16xf32, #tpu.memory_space<vmem>>, %arg2: memref<32x16xbf16, #tpu.memory_space<vmem>>, %arg3: memref<32x1xf32, #tpu.memory_space<vmem>>, %arg4: memref<16x32xbf16, #tpu.memory_space<vmem>>, %arg5: memref<16x1xf32, #tpu.memory_space<vmem>>, %arg6: memref<16x128xf32, #tpu.memory_space<vmem>>) attributes {dimension_semantics = [#tpu.dimension_semantics<parallel>], iteration_bounds = array<i64: 1>, scalar_prefetch = 0 : i64, scratch_operands = 0 : i64, tpu.core_type = #tpu.core_type<tc>, window_params = [{transform_indices = @transform_0, window_bounds = array<i64: 128, 16>}, {pipeline_mode = #tpu.pipeline_mode<synchronous>, transform_indices = @transform_1, window_bounds = array<i64: 32, 16>}, {pipeline_mode = #tpu.pipeline_mode<synchronous>, transform_indices = @transform_2, window_bounds = array<i64: 32, 1>}, {pipeline_mode = #tpu.pipeline_mode<synchronous>, transform_indices = @transform_3, window_bounds = array<i64: 16, 32>}, {pipeline_mode = #tpu.pipeline_mode<synchronous>, transform_indices = @transform_4, window_bounds = array<i64: 16, 1>}, {transform_indices = @transform_5, window_bounds = array<i64: 16, 128>}]} {
    %c0 = arith.constant 0 : index
    %c0_0 = arith.constant 0 : index
    %0 = vector.load %arg1[%c0, %c0_0] : memref<128x16xf32, #tpu.memory_space<vmem>>, vector<128x16xf32>
    %1 = arith.truncf %0 : vector<128x16xf32> to vector<128x16xbf16>
    %c0_1 = arith.constant 0 : index
    %c0_2 = arith.constant 0 : index
    %2 = vector.load %arg2[%c0_1, %c0_2] : memref<32x16xbf16, #tpu.memory_space<vmem>>, vector<32x16xbf16>
    %cst = arith.constant dense<0.000000e+00> : vector<32x128xf32>
    %3 = tpu.matmul %2, %1, %cst {dimension_numbers = #tpu.dot_dimension_numbers<[1], [1], [0], [0], [0, 0, 1, 0], [], []>} : vector<32x16xbf16>, vector<128x16xbf16>, vector<32x128xf32> -> vector<32x128xf32>
    %c0_3 = arith.constant 0 : index
    %c0_4 = arith.constant 0 : index
    %4 = vector.load %arg3[%c0_3, %c0_4] : memref<32x1xf32, #tpu.memory_space<vmem>>, vector<32x1xf32>
    %5 = vector.broadcast %4 : vector<32x1xf32> to vector<32x128xf32>
    %6 = arith.addf %3, %5 : vector<32x128xf32>
    %cst_5 = arith.constant 5.000000e-01 : f32
    %7 = vector.broadcast %cst_5 : f32 to vector<32x128xf32>
    %8 = arith.mulf %7, %6 : vector<32x128xf32>
    %cst_6 = arith.constant 0.707106769 : f32
    %9 = vector.broadcast %cst_6 : f32 to vector<32x128xf32>
    %10 = arith.mulf %6, %9 : vector<32x128xf32>
    %11 = math.erf %10 : vector<32x128xf32>
    %cst_7 = arith.constant 1.000000e+00 : f32
    %12 = vector.broadcast %cst_7 : f32 to vector<32x128xf32>
    %13 = arith.addf %12, %11 : vector<32x128xf32>
    %14 = arith.mulf %8, %13 : vector<32x128xf32>
    %c0_8 = arith.constant 0 : index
    %c0_9 = arith.constant 0 : index
    %15 = vector.load %arg4[%c0_8, %c0_9] : memref<16x32xbf16, #tpu.memory_space<vmem>>, vector<16x32xbf16>
    %16 = arith.truncf %14 : vector<32x128xf32> to vector<32x128xbf16>
    %cst_10 = arith.constant dense<0.000000e+00> : vector<16x128xf32>
    %17 = tpu.matmul %15, %16, %cst_10 {dimension_numbers = #tpu.dot_dimension_numbers<[1], [0], [0], [1], [0, 0, 1, 1], [], []>} : vector<16x32xbf16>, vector<32x128xbf16>, vector<16x128xf32> -> vector<16x128xf32>
    %c0_11 = arith.constant 0 : index
    %c0_12 = arith.constant 0 : index
    %18 = vector.load %arg5[%c0_11, %c0_12] : memref<16x1xf32, #tpu.memory_space<vmem>>, vector<16x1xf32>
    %19 = vector.broadcast %18 : vector<16x1xf32> to vector<16x128xf32>
    %20 = arith.addf %17, %19 : vector<16x128xf32>
    %c0_13 = arith.constant 0 : index
    %c0_14 = arith.constant 0 : index
    %21 = vector.load %arg6[%c0_13, %c0_14] : memref<16x128xf32, #tpu.memory_space<vmem>>, vector<16x128xf32>
    tpu.vector_store %arg6[%c0_13, %c0_14], %20 {strides = array<i32>} : memref<16x128xf32, #tpu.memory_space<vmem>>, vector<16x128xf32>,
    return
  }
  func.func @transform_0(%arg0: i32) -> (i32, i32) {
    %c0_i32 = arith.constant 0 : i32
    %c0_i32_0 = arith.constant 0 : i32
    return %arg0, %c0_i32 : i32, i32
  }
  func.func @transform_1(%arg0: i32) -> (i32, i32) {
    %c0_i32 = arith.constant 0 : i32
    %c0_i32_0 = arith.constant 0 : i32
    %c0_i32_1 = arith.constant 0 : i32
    return %c0_i32, %c0_i32_0 : i32, i32
  }
  func.func @transform_2(%arg0: i32) -> (i32, i32) {
    %c0_i32 = arith.constant 0 : i32
    %c0_i32_0 = arith.constant 0 : i32
    %c0_i32_1 = arith.constant 0 : i32
    return %c0_i32, %c0_i32_0 : i32, i32
  }
  func.func @transform_3(%arg0: i32) -> (i32, i32) {
    %c0_i32 = arith.constant 0 : i32
    %c0_i32_0 = arith.constant 0 : i32
    %c0_i32_1 = arith.constant 0 : i32
    return %c0_i32, %c0_i32_0 : i32, i32
  }
  func.func @transform_4(%arg0: i32) -> (i32, i32) {
    %c0_i32 = arith.constant 0 : i32
    %c0_i32_0 = arith.constant 0 : i32
    %c0_i32_1 = arith.constant 0 : i32
    return %c0_i32, %c0_i32_0 : i32, i32
  }
  func.func @transform_5(%arg0: i32) -> (i32, i32) {
    %c0_i32 = arith.constant 0 : i32
    %c0_i32_0 = arith.constant 0 : i32
    return %c0_i32, %arg0 : i32, i32
  }
}

module attributes {stable_mosaic.version = 11 : i64} {
  func.func @mlp_kernel(%arg0: i32, %arg1: memref<128x16xf32, #tpu.memory_space<vmem>>, %arg2: memref<32x16xbf16, #tpu.memory_space<vmem>>, %arg3: memref<32x1xf32, #tpu.memory_space<vmem>>, %arg4: memref<16x32xbf16, #tpu.memory_space<vmem>>, %arg5: memref<16x1xf32, #tpu.memory_space<vmem>>, %arg6: memref<16x128xf32, #tpu.memory_space<vmem>>) attributes {dimension_semantics = [#tpu.dimension_semantics<parallel>], iteration_bounds = array<i64: 1>, scalar_prefetch = 0 : i64, scratch_operands = 0 : i64, tpu.core_type = #tpu.core_type<tc>, window_params = [{transform_indices = @transform_0, window_bounds = array<i64: 128, 16>}, {pipeline_mode = #tpu.pipeline_mode<synchronous>, transform_indices = @transform_1, window_bounds = array<i64: 32, 16>}, {pipeline_mode = #tpu.pipeline_mode<synchronous>, transform_indices = @transform_2, window_bounds = array<i64: 32, 1>}, {pipeline_mode = #tpu.pipeline_mode<synchronous>, transform_indices = @transform_3, window_bounds = array<i64: 16, 32>}, {pipeline_mode = #tpu.pipeline_mode<synchronous>, transform_indices = @transform_4, window_bounds = array<i64: 16, 1>}, {transform_indices = @transform_5, window_bounds = array<i64: 16, 128>}]} {
    %c0 = arith.constant 0 : index
    %c0_0 = arith.constant 0 : index
    %0 = vector.load %arg1[%c0, %c0_0] : memref<128x16xf32, #tpu.memory_space<vmem>>, vector<128x16xf32>
    %1 = arith.truncf %0 : vector<128x16xf32> to vector<128x16xbf16>
    %c0_1 = arith.constant 0 : index
    %c0_2 = arith.constant 0 : index
    %2 = vector.load %arg2[%c0_1, %c0_2] : memref<32x16xbf16, #tpu.memory_space<vmem>>, vector<32x16xbf16>
    %cst = arith.constant dense<0.000000e+00> : vector<32x128xf32>
    %3 = tpu.matmul %2, %1, %cst {dimension_numbers = #tpu.dot_dimension_numbers<[1], [1], [0], [0], [0, 0, 1, 0], [], []>} : vector<32x16xbf16>, vector<128x16xbf16>, vector<32x128xf32> -> vector<32x128xf32>
    %c0_3 = arith.constant 0 : index
    %c0_4 = arith.constant 0 : index
    %4 = vector.load %arg3[%c0_3, %c0_4] : memref<32x1xf32, #tpu.memory_space<vmem>>, vector<32x1xf32>
    %5 = vector.broadcast %4 : vector<32x1xf32> to vector<32x128xf32>
    %6 = arith.addf %3, %5 : vector<32x128xf32>
    %cst_5 = arith.constant 5.000000e-01 : f32
    %7 = vector.broadcast %cst_5 : f32 to vector<32x128xf32>
    %8 = arith.mulf %7, %6 : vector<32x128xf32>
    %cst_6 = arith.constant 0.707106769 : f32
    %9 = vector.broadcast %cst_6 : f32 to vector<32x128xf32>
    %10 = arith.mulf %6, %9 : vector<32x128xf32>
    %11 = math.erf %10 : vector<32x128xf32>
    %cst_7 = arith.constant 1.000000e+00 : f32
    %12 = vector.broadcast %cst_7 : f32 to vector<32x128xf32>
    %13 = arith.addf %12, %11 : vector<32x128xf32>
    %14 = arith.mulf %8, %13 : vector<32x128xf32>
    %c0_8 = arith.constant 0 : index
    %c0_9 = arith.constant 0 : index
    %15 = vector.load %arg4[%c0_8, %c0_9] : memref<16x32xbf16, #tpu.memory_space<vmem>>, vector<16x32xbf16>
    %16 = arith.truncf %14 : vector<32x128xf32> to vector<32x128xbf16>
    %cst_10 = arith.constant dense<0.000000e+00> : vector<16x128xf32>
    %17 = tpu.matmul %15, %16, %cst_10 {dimension_numbers = #tpu.dot_dimension_numbers<[1], [0], [0], [1], [0, 0, 1, 1], [], []>} : vector<16x32xbf16>, vector<32x128xbf16>, vector<16x128xf32> -> vector<16x128xf32>
    %c0_11 = arith.constant 0 : index
    %c0_12 = arith.constant 0 : index
    %18 = vector.load %arg5[%c0_11, %c0_12] : memref<16x1xf32, #tpu.memory_space<vmem>>, vector<16x1xf32>
    %19 = vector.broadcast %18 : vector<16x1xf32> to vector<16x128xf32>
    %20 = arith.addf %17, %19 : vector<16x128xf32>
    %c0_13 = arith.constant 0 : index
    %c0_14 = arith.constant 0 : index
    %21 = vector.load %arg6[%c0_13, %c0_14] : memref<16x128xf32, #tpu.memory_space<vmem>>, vector<16x128xf32>
    tpu.vector_store %arg6[%c0_13, %c0_14], %20 {strides = array<i32>} : memref<16x128xf32, #tpu.memory_space<vmem>>, vector<16x128xf32>,
    return
  }
  func.func @transform_0(%arg0: i32) -> (i32, i32) {
    %c0_i32 = arith.constant 0 : i32
    %c0_i32_0 = arith.constant 0 : i32
    return %arg0, %c0_i32 : i32, i32
  }
  func.func @transform_1(%arg0: i32) -> (i32, i32) {
    %c0_i32 = arith.constant 0 : i32
    %c0_i32_0 = arith.constant 0 : i32
    %c0_i32_1 = arith.constant 0 : i32
    return %c0_i32, %c0_i32_0 : i32, i32
  }
  func.func @transform_2(%arg0: i32) -> (i32, i32) {
    %c0_i32 = arith.constant 0 : i32
    %c0_i32_0 = arith.constant 0 : i32
    %c0_i32_1 = arith.constant 0 : i32
    return %c0_i32, %c0_i32_0 : i32, i32
  }
  func.func @transform_3(%arg0: i32) -> (i32, i32) {
    %c0_i32 = arith.constant 0 : i32
    %c0_i32_0 = arith.constant 0 : i32
    %c0_i32_1 = arith.constant 0 : i32
    return %c0_i32, %c0_i32_0 : i32, i32
  }
  func.func @transform_4(%arg0: i32) -> (i32, i32) {
    %c0_i32 = arith.constant 0 : i32
    %c0_i32_0 = arith.constant 0 : i32
    %c0_i32_1 = arith.constant 0 : i32
    return %c0_i32, %c0_i32_0 : i32, i32
  }
  func.func @transform_5(%arg0: i32) -> (i32, i32) {
    %c0_i32 = arith.constant 0 : i32
    %c0_i32_0 = arith.constant 0 : i32
    return %c0_i32, %arg0 : i32, i32
  }
}

</mosaic_0001>

<llo_original>
// kernel: tpu_custom_call.1
$region0: #{tpu_custom_call.1}
  #allocation0 [shape = 'u32[]', space=smem, size = 0x4, offset = 0x4, fixed_abs, tag = 'smem constant byte address 0x4 - core index']
  #allocation1 [shape = 'u32[144,128]{1,0:T(1,128)}', space=vmem, size = 0x12000, scoped, tag = 'internal scratch']
  %s0 = inlined_call_operand.vmem [shape: f32[8,16], index: 0, kind: input, shape index: {}]
  %s1 = inlined_call_operand.vmem [shape: bf16[32,16], index: 1, kind: input, shape index: {}]
  %s2 = inlined_call_operand.vmem [shape: f32[32,1], index: 2, kind: input, shape index: {}]
  %s3 = inlined_call_operand.vmem [shape: bf16[16,32], index: 3, kind: input, shape index: {}]
  %s4 = inlined_call_operand.vmem [shape: f32[16,1], index: 4, kind: input, shape index: {}]
  %s5 = inlined_call_operand.hbm [shape: f32[16,128], index: 5, kind: output, shape index: {}]
  %s6 = sld [smem:[#allocation0]]
  $region30: #{tpu_custom_call.1} parent=0
    _
  %s8 = ssub.s32 1, %s6
  %s9 = scalar_select 0, %s8, %s6
  $region1: #{tpu_custom_call.1} parent=0
    #allocation2 [shape = 'u8[8192]{0}', space=vmem, size = 0x2000, scoped, tag = 'output window, operand 0, single buffered']
    #allocation3 [shape = 's32[1]{0}', space=sflag, size = 0x4, scoped, tag = 'scoped memory for tpu_custom_call.1']
    %10 = vsyncpa [#allocation3], 0
    // Predicated region
    $region2: #{tpu_custom_call.1} parent=1 // pred_check
      _
    $region3: #{tpu_custom_call.1} parent=1 // pred_check_branch
      %12 = sbr.rel (0) target = $region5
    $region4: #{tpu_custom_call.1} parent=1 // pred_region
      _
    $region5: #{tpu_custom_call.1} parent=1 // pred_fallthru
      _
    // Predicated region
    $region6: #{tpu_custom_call.1} parent=1 // pred_check
      _
    $region7: #{tpu_custom_call.1} parent=1 // pred_check_branch
      %14 = sbr.rel (0) target = $region9
    $region8: #{tpu_custom_call.1} parent=1 // pred_region
      _
    $region9: #{tpu_custom_call.1} parent=1 // pred_fallthru
      _
    // Predicated region
    $region10: #{tpu_custom_call.1} parent=1 // pred_check
      _
    $region11: #{tpu_custom_call.1} parent=1 // pred_check_branch
      %16 = sbr.rel (0) target = $region13
    $region12: #{tpu_custom_call.1} parent=1 // pred_region
      _
    $region13: #{tpu_custom_call.1} parent=1 // pred_fallthru
      _
    // Predicated region
    $region14: #{tpu_custom_call.1} parent=1 // pred_check
      _
    $region15: #{tpu_custom_call.1} parent=1 // pred_check_branch
      %18 = sbr.rel (0) target = $region17
    $region16: #{tpu_custom_call.1} parent=1 // pred_region
      _
    $region17: #{tpu_custom_call.1} parent=1 // pred_fallthru
      _
    // Predicated region
    $region18: #{tpu_custom_call.1} parent=1 // pred_check
      _
    $region19: #{tpu_custom_call.1} parent=1 // pred_check_branch
      %20 = sbr.rel (0) target = $region21
    $region20: #{tpu_custom_call.1} parent=1 // pred_region
      _
    $region21: #{tpu_custom_call.1} parent=1 // pred_fallthru
      _
    %v22 = vld [vmem:[%s0] sm:$0xff]
    %v23 = vld [vmem:[%s0 + $0x8] sm:$0xff]
    %v24 = vld [vmem:[%s0 + $0x10] sm:$0xff]
    %v25 = vld [vmem:[%s0 + $0x18] sm:$0xff]
    %v26 = vld [vmem:[%s0 + $0x20] sm:$0xff]
    %v27 = vld [vmem:[%s0 + $0x28] sm:$0xff]
    %v28 = vld [vmem:[%s0 + $0x30] sm:$0xff]
    %v29 = vld [vmem:[%s0 + $0x38] sm:$0xff]
    %v30 = vld [vmem:[%s0 + $0x40] sm:$0xff]
    %v31 = vld [vmem:[%s0 + $0x48] sm:$0xff]
    %v32 = vld [vmem:[%s0 + $0x50] sm:$0xff]
    %v33 = vld [vmem:[%s0 + $0x58] sm:$0xff]
    %v34 = vld [vmem:[%s0 + $0x60] sm:$0xff]
    %v35 = vld [vmem:[%s0 + $0x68] sm:$0xff]
    %v36 = vld [vmem:[%s0 + $0x70] sm:$0xff]
    %v37 = vld [vmem:[%s0 + $0x78] sm:$0xff]
    %v38 = vpack.c.bf16 %v23, %v22
    %v39 = vpack.c.bf16 %v25, %v24
    %v40 = vpack.c.bf16 %v27, %v26
    %v41 = vpack.c.bf16 %v29, %v28
    %v42 = vpack.c.bf16 %v31, %v30
    %v43 = vpack.c.bf16 %v33, %v32
    %v44 = vpack.c.bf16 %v35, %v34
    %v45 = vpack.c.bf16 %v37, %v36
    %v46 = vld [vmem:[%s1] sm:$0xf]
    %v47 = vld [vmem:[%s1 + $0x4] sm:$0xf]
    %v48 = vld [vmem:[%s1 + $0x8] sm:$0xf]
    %v49 = vld [vmem:[%s1 + $0xc] sm:$0xf]
    %v50 = vld [vmem:[%s2] sm:$0xff]
    %v51 = vld [vmem:[%s2 + $0x8] sm:$0xff]
    %v52 = vld [vmem:[%s2 + $0x10] sm:$0xff]
    %v53 = vld [vmem:[%s2 + $0x18] sm:$0xff]
    %55 = vset.pattern.permute.xlu0 0
    %56 = vperm.xlu0 %55, %v50
    %v57 = vpop.permute.xlu0 %56
    %60 = vset.pattern.permute.xlu0 0
    %61 = vperm.xlu0 %60, %v51
    %v62 = vpop.permute.xlu0 %61
    %65 = vset.pattern.permute.xlu0 0
    %66 = vperm.xlu0 %65, %v52
    %v67 = vpop.permute.xlu0 %66
    %70 = vset.pattern.permute.xlu0 0
    %71 = vperm.xlu0 %70, %v53
    %v72 = vpop.permute.xlu0 %71
    %v78 = vunpack.c.l.b16 %v46
    %v79 = vunpack.c.l.b16 %v47
    %v80 = vunpack.c.l.b16 %v48
    %v81 = vunpack.c.l.b16 %v49
    %v82 = vpack.c.b16 %v79, %v78
    %v83 = vpack.c.b16 %v81, %v80
    %vm84 = vcmask 130048
    %v86 = vsel %vm84, %v82, 0
    %v89 = vsel %vm84, %v83, 0
    %v92 = vsel %vm84, %v38, 0
    %v95 = vsel %vm84, %v39, 0
    %v98 = vsel %vm84, %v40, 0
    %v101 = vsel %vm84, %v41, 0
    %v104 = vsel %vm84, %v42, 0
    %v107 = vsel %vm84, %v43, 0
    %v110 = vsel %vm84, %v44, 0
    %v113 = vsel %vm84, %v45, 0
    %115 = vmatprep.subr.bf16.mxu0 0
    %116 = vmatpush1.bf16.xpose.msra.mxu0 %v113
    %117 = vmatprep.subr.bf16.mxu0 0
    %118 = vmatpush1.bf16.xpose.msra.mxu0 %v110
    %119 = vmatprep.subr.bf16.mxu0 0
    %120 = vmatpush1.bf16.xpose.msra.mxu0 %v107
    %121 = vmatprep.subr.bf16.mxu0 0
    %122 = vmatpush1.bf16.xpose.msra.mxu0 %v104
    %123 = vmatprep.subr.bf16.mxu0 0
    %124 = vmatpush1.bf16.xpose.msra.mxu0 %v101
    %125 = vmatprep.subr.bf16.mxu0 0
    %126 = vmatpush1.bf16.xpose.msra.mxu0 %v98
    %127 = vmatprep.subr.bf16.mxu0 0
    %128 = vmatpush1.bf16.xpose.msra.mxu0 %v95
    %129 = vmatprep.subr.bf16.mxu0 0
    %130 = vmatpush1.bf16.xpose.msra.mxu0 %v92
    %131 = vmatprep.subr.bf16.mxu0 0
    %132 = vmatpush2.bf16.xpose.msra.mxu0 0
    %133 = vmatprep.subr.bf16.mxu0 0
    %134 = vmatpush2.bf16.xpose.msra.mxu0 0
    %135 = vmatprep.subr.bf16.mxu0 0
    %136 = vmatpush2.bf16.xpose.msra.mxu0 0
    %137 = vmatprep.subr.bf16.mxu0 0
    %138 = vmatpush2.bf16.xpose.msra.mxu0 0
    %139 = vmatprep.subr.bf16.mxu0 0
    %140 = vmatpush2.bf16.xpose.msra.mxu0 0
    %141 = vmatprep.subr.bf16.mxu0 0
    %142 = vmatpush2.bf16.xpose.msra.mxu0 0
    %143 = vmatprep.subr.bf16.mxu0 0
    %144 = vmatpush2.bf16.xpose.msra.mxu0 0
    %145 = vmatprep.subr.bf16.mxu0 0
    %146 = vmatpush2.bf16.xpose.msra.mxu0 0
    %147 = vmatprep.mubr.bf16.mxu0 0
    %148 = vmatmul.mubr.bf16.gmra.mxu0 %v86
    %v149 = vpop.f32.mrf.mxu0
    %v150 = vadd.f32 %v57, %v149
    %v151 = vpop.f32.mrf.mxu0
    %v152 = vpop.f32.mrf.mxu0
    %v153 = vadd.f32 %v62, %v152
    %v154 = vpop.f32.mrf.mxu0
    %155 = vmatprep.mubr.bf16.mxu0 0
    %156 = vmatmul.mubr.bf16.gmra.mxu0 %v89
    %v157 = vpop.f32.mrf.mxu0
    %v158 = vadd.f32 %v67, %v157
    %v159 = vpop.f32.mrf.mxu0
    %v160 = vpop.f32.mrf.mxu0
    %v161 = vadd.f32 %v72, %v160
    %v162 = vpop.f32.mrf.mxu0
    %163 = vdwg.mxu0
    %v164 = vmul.f32 %v150, 0.5
    %v165 = vmul.f32 %v153, 0.5
    %v166 = vmul.f32 %v158, 0.5
    %v167 = vmul.f32 %v161, 0.5
    %v168 = vmul.f32 %v150, 0.70710677
    %v169 = vmul.f32 %v153, 0.70710677
    %v170 = vmul.f32 %v158, 0.70710677
    %v171 = vmul.f32 %v161, 0.70710677
    %v172 = verf.f32.pop %v168
    %v173 = verf.f32.pop %v169
    %v174 = verf.f32.pop %v170
    %v175 = verf.f32.pop %v171
    %v176 = vadd.f32 %v172, 1.0
    %v177 = vadd.f32 %v173, 1.0
    %v178 = vadd.f32 %v174, 1.0
    %v179 = vadd.f32 %v175, 1.0
    %v180 = vmul.f32 %v164, %v176
    %v181 = vmul.f32 %v165, %v177
    %v182 = vmul.f32 %v166, %v178
    %v183 = vmul.f32 %v167, %v179
    %v184 = vld [vmem:[%s3] sm:$0xf]
    %v185 = vld [vmem:[%s3 + $0x4] sm:$0xf]
    %v186 = vpack.c.bf16 %v181, %v180
    %v187 = vpack.c.bf16 %v183, %v182
    %v188 = vld [vmem:[%s4] sm:$0xff]
    %v189 = vld [vmem:[%s4 + $0x8] sm:$0xff]
    %191 = vset.pattern.permute.xlu0 0
    %192 = vperm.xlu0 %191, %v188
    %v193 = vpop.permute.xlu0 %192
    %196 = vset.pattern.permute.xlu0 0
    %197 = vperm.xlu0 %196, %v189
    %v198 = vpop.permute.xlu0 %197
    %v202 = vunpack.c.l.b16 %v184
    %v203 = vunpack.c.l.b16 %v185
    %v204 = vpack.c.b16 %v203, %v202
    %vm205 = vcmask 261120
    %v207 = vsel %vm205, %v204, 0
    %209 = vmatprep.subr.bf16.mxu0 0
    %210 = vmatpush1.bf16.msra.mxu0 0
    %211 = vmatprep.subr.bf16.mxu0 0
    %212 = vmatpush1.bf16.msra.mxu0 0
    %213 = vmatprep.subr.bf16.mxu0 0
    %214 = vmatpush1.bf16.msra.mxu0 0
    %215 = vmatprep.subr.bf16.mxu0 0
    %216 = vmatpush1.bf16.msra.mxu0 0
    %217 = vmatprep.subr.bf16.mxu0 0
    %218 = vmatpush1.bf16.msra.mxu0 0
    %219 = vmatprep.subr.bf16.mxu0 0
    %220 = vmatpush1.bf16.msra.mxu0 0
    %221 = vmatprep.subr.bf16.mxu0 0
    %222 = vmatpush1.bf16.msra.mxu0 %v187
    %223 = vmatprep.subr.bf16.mxu0 0
    %224 = vmatpush1.bf16.msra.mxu0 %v186
    %225 = vmatprep.subr.bf16.mxu0 0
    %226 = vmatpush2.bf16.msra.mxu0 0
    %227 = vmatprep.subr.bf16.mxu0 0
    %228 = vmatpush2.bf16.msra.mxu0 0
    %229 = vmatprep.subr.bf16.mxu0 0
    %230 = vmatpush2.bf16.msra.mxu0 0
    %231 = vmatprep.subr.bf16.mxu0 0
    %232 = vmatpush2.bf16.msra.mxu0 0
    %233 = vmatprep.subr.bf16.mxu0 0
    %234 = vmatpush2.bf16.msra.mxu0 0
    %235 = vmatprep.subr.bf16.mxu0 0
    %236 = vmatpush2.bf16.msra.mxu0 0
    %237 = vmatprep.subr.bf16.mxu0 0
    %238 = vmatpush2.bf16.msra.mxu0 0
    %239 = vmatprep.subr.bf16.mxu0 0
    %240 = vmatpush2.bf16.msra.mxu0 0
    %241 = vmatprep.mubr.bf16.mxu0 0
    %242 = vmatmul.mubr.bf16.gmra.mxu0 %v207
    %v243 = vpop.f32.mrf.mxu0
    %v244 = vadd.f32 %v193, %v243
    %v245 = vpop.f32.mrf.mxu0
    %v246 = vpop.f32.mrf.mxu0
    %v247 = vadd.f32 %v198, %v246
    %v248 = vpop.f32.mrf.mxu0
    %249 = vdwg.mxu0
    %250 = vst [vmem:[#allocation2] sm:$0xff] %v244
    %251 = vst [vmem:[#allocation2 + $0x8] sm:$0xff] %v247
    // Predicated region
    $region22: #{tpu_custom_call.1} parent=1 // pred_check
      _
    $region23: #{tpu_custom_call.1} parent=1 // pred_check_branch
      %253 = sbr.rel (0) target = $region25
    $region24: #{tpu_custom_call.1} parent=1 // pred_region
      %s255 = ssub.s32 256, 256
      %256 = vsyncadd [#allocation3], %s255
      %s257 = sshll.u32 [#allocation2], 4
      %s258 = int_to_ptr.vmem [resolvable:$true] %s257
      %263 = dma.vmem_to_hbm [thread:$0]  %s258, 256, %s5, [#allocation3], 128, 128, 8
    $region25: #{tpu_custom_call.1} parent=1 // pred_fallthru
      _
    // Predicated region
    $region26: #{tpu_custom_call.1} parent=1 // pred_check
      _
    $region27: #{tpu_custom_call.1} parent=1 // pred_check_branch
      %265 = sbr.rel (0) target = $region29
    $region28: #{tpu_custom_call.1} parent=1 // pred_region
      %266 = dma.done [#allocation3], 256
    $region29: #{tpu_custom_call.1} parent=1 // pred_fallthru
      _
    %267 = vsyncpa [#allocation3], 1

// kernel: tpu_custom_call.1
$region0: #{tpu_custom_call.1}
  #allocation0 [shape = 'u32[]', space=smem, size = 0x4, offset = 0x4, fixed_abs, tag = 'smem constant byte address 0x4 - core index']
  #allocation1 [shape = 'u32[144,128]{1,0:T(1,128)}', space=vmem, size = 0x12000, scoped, tag = 'internal scratch']
  %s0 = inlined_call_operand.vmem [shape: f32[128,16], index: 0, kind: input, shape index: {}]
  %s1 = inlined_call_operand.vmem [shape: bf16[32,16], index: 1, kind: input, shape index: {}]
  %s2 = inlined_call_operand.vmem [shape: f32[32,1], index: 2, kind: input, shape index: {}]
  %s3 = inlined_call_operand.vmem [shape: bf16[16,32], index: 3, kind: input, shape index: {}]
  %s4 = inlined_call_operand.vmem [shape: f32[16,1], index: 4, kind: input, shape index: {}]
  %s5 = inlined_call_operand.hbm [shape: f32[16,128], index: 5, kind: output, shape index: {}]
  %s6 = sld [smem:[#allocation0]]
  $region30: #{tpu_custom_call.1} parent=0
    _
  %s8 = ssub.s32 1, %s6
  %s9 = scalar_select 0, %s8, %s6
  $region1: #{tpu_custom_call.1} parent=0
    #allocation2 [shape = 'u8[8192]{0}', space=vmem, size = 0x2000, scoped, tag = 'output window, operand 0, single buffered']
    #allocation3 [shape = 's32[1]{0}', space=sflag, size = 0x4, scoped, tag = 'scoped memory for tpu_custom_call.1']
    %10 = vsyncpa [#allocation3], 0
    // Predicated region
    $region2: #{tpu_custom_call.1} parent=1 // pred_check
      _
    $region3: #{tpu_custom_call.1} parent=1 // pred_check_branch
      %12 = sbr.rel (0) target = $region5
    $region4: #{tpu_custom_call.1} parent=1 // pred_region
      _
    $region5: #{tpu_custom_call.1} parent=1 // pred_fallthru
      _
    // Predicated region
    $region6: #{tpu_custom_call.1} parent=1 // pred_check
      _
    $region7: #{tpu_custom_call.1} parent=1 // pred_check_branch
      %14 = sbr.rel (0) target = $region9
    $region8: #{tpu_custom_call.1} parent=1 // pred_region
      _
    $region9: #{tpu_custom_call.1} parent=1 // pred_fallthru
      _
    // Predicated region
    $region10: #{tpu_custom_call.1} parent=1 // pred_check
      _
    $region11: #{tpu_custom_call.1} parent=1 // pred_check_branch
      %16 = sbr.rel (0) target = $region13
    $region12: #{tpu_custom_call.1} parent=1 // pred_region
      _
    $region13: #{tpu_custom_call.1} parent=1 // pred_fallthru
      _
    // Predicated region
    $region14: #{tpu_custom_call.1} parent=1 // pred_check
      _
    $region15: #{tpu_custom_call.1} parent=1 // pred_check_branch
      %18 = sbr.rel (0) target = $region17
    $region16: #{tpu_custom_call.1} parent=1 // pred_region
      _
    $region17: #{tpu_custom_call.1} parent=1 // pred_fallthru
      _
    // Predicated region
    $region18: #{tpu_custom_call.1} parent=1 // pred_check
      _
    $region19: #{tpu_custom_call.1} parent=1 // pred_check_branch
      %20 = sbr.rel (0) target = $region21
    $region20: #{tpu_custom_call.1} parent=1 // pred_region
      _
    $region21: #{tpu_custom_call.1} parent=1 // pred_fallthru
      _
    %v22 = vld [vmem:[%s0] sm:$0xff]
    %v23 = vld [vmem:[%s0 + $0x8] sm:$0xff]
    %v24 = vld [vmem:[%s0 + $0x10] sm:$0xff]
    %v25 = vld [vmem:[%s0 + $0x18] sm:$0xff]
    %v26 = vld [vmem:[%s0 + $0x20] sm:$0xff]
    %v27 = vld [vmem:[%s0 + $0x28] sm:$0xff]
    %v28 = vld [vmem:[%s0 + $0x30] sm:$0xff]
    %v29 = vld [vmem:[%s0 + $0x38] sm:$0xff]
    %v30 = vld [vmem:[%s0 + $0x40] sm:$0xff]
    %v31 = vld [vmem:[%s0 + $0x48] sm:$0xff]
    %v32 = vld [vmem:[%s0 + $0x50] sm:$0xff]
    %v33 = vld [vmem:[%s0 + $0x58] sm:$0xff]
    %v34 = vld [vmem:[%s0 + $0x60] sm:$0xff]
    %v35 = vld [vmem:[%s0 + $0x68] sm:$0xff]
    %v36 = vld [vmem:[%s0 + $0x70] sm:$0xff]
    %v37 = vld [vmem:[%s0 + $0x78] sm:$0xff]
    %v38 = vpack.c.bf16 %v23, %v22
    %v39 = vpack.c.bf16 %v25, %v24
    %v40 = vpack.c.bf16 %v27, %v26
    %v41 = vpack.c.bf16 %v29, %v28
    %v42 = vpack.c.bf16 %v31, %v30
    %v43 = vpack.c.bf16 %v33, %v32
    %v44 = vpack.c.bf16 %v35, %v34
    %v45 = vpack.c.bf16 %v37, %v36
    %v46 = vld [vmem:[%s1] sm:$0xf]
    %v47 = vld [vmem:[%s1 + $0x4] sm:$0xf]
    %v48 = vld [vmem:[%s1 + $0x8] sm:$0xf]
    %v49 = vld [vmem:[%s1 + $0xc] sm:$0xf]
    %v50 = vld [vmem:[%s2] sm:$0xff]
    %v51 = vld [vmem:[%s2 + $0x8] sm:$0xff]
    %v52 = vld [vmem:[%s2 + $0x10] sm:$0xff]
    %v53 = vld [vmem:[%s2 + $0x18] sm:$0xff]
    %55 = vset.pattern.permute.xlu0 0
    %56 = vperm.xlu0 %55, %v50
    %v57 = vpop.permute.xlu0 %56
    %60 = vset.pattern.permute.xlu0 0
    %61 = vperm.xlu0 %60, %v51
    %v62 = vpop.permute.xlu0 %61
    %65 = vset.pattern.permute.xlu0 0
    %66 = vperm.xlu0 %65, %v52
    %v67 = vpop.permute.xlu0 %66
    %70 = vset.pattern.permute.xlu0 0
    %71 = vperm.xlu0 %70, %v53
    %v72 = vpop.permute.xlu0 %71
    %v78 = vunpack.c.l.b16 %v46
    %v79 = vunpack.c.l.b16 %v47
    %v80 = vunpack.c.l.b16 %v48
    %v81 = vunpack.c.l.b16 %v49
    %v82 = vpack.c.b16 %v79, %v78
    %v83 = vpack.c.b16 %v81, %v80
    %vm84 = vcmask 130048
    %v86 = vsel %vm84, %v82, 0
    %v89 = vsel %vm84, %v83, 0
    %v92 = vsel %vm84, %v38, 0
    %v95 = vsel %vm84, %v39, 0
    %v98 = vsel %vm84, %v40, 0
    %v101 = vsel %vm84, %v41, 0
    %v104 = vsel %vm84, %v42, 0
    %v107 = vsel %vm84, %v43, 0
    %v110 = vsel %vm84, %v44, 0
    %v113 = vsel %vm84, %v45, 0
    %115 = vmatprep.subr.bf16.mxu0 0
    %116 = vmatpush1.bf16.xpose.msra.mxu0 %v113
    %117 = vmatprep.subr.bf16.mxu0 0
    %118 = vmatpush1.bf16.xpose.msra.mxu0 %v110
    %119 = vmatprep.subr.bf16.mxu0 0
    %120 = vmatpush1.bf16.xpose.msra.mxu0 %v107
    %121 = vmatprep.subr.bf16.mxu0 0
    %122 = vmatpush1.bf16.xpose.msra.mxu0 %v104
    %123 = vmatprep.subr.bf16.mxu0 0
    %124 = vmatpush1.bf16.xpose.msra.mxu0 %v101
    %125 = vmatprep.subr.bf16.mxu0 0
    %126 = vmatpush1.bf16.xpose.msra.mxu0 %v98
    %127 = vmatprep.subr.bf16.mxu0 0
    %128 = vmatpush1.bf16.xpose.msra.mxu0 %v95
    %129 = vmatprep.subr.bf16.mxu0 0
    %130 = vmatpush1.bf16.xpose.msra.mxu0 %v92
    %131 = vmatprep.subr.bf16.mxu0 0
    %132 = vmatpush2.bf16.xpose.msra.mxu0 0
    %133 = vmatprep.subr.bf16.mxu0 0
    %134 = vmatpush2.bf16.xpose.msra.mxu0 0
    %135 = vmatprep.subr.bf16.mxu0 0
    %136 = vmatpush2.bf16.xpose.msra.mxu0 0
    %137 = vmatprep.subr.bf16.mxu0 0
    %138 = vmatpush2.bf16.xpose.msra.mxu0 0
    %139 = vmatprep.subr.bf16.mxu0 0
    %140 = vmatpush2.bf16.xpose.msra.mxu0 0
    %141 = vmatprep.subr.bf16.mxu0 0
    %142 = vmatpush2.bf16.xpose.msra.mxu0 0
    %143 = vmatprep.subr.bf16.mxu0 0
    %144 = vmatpush2.bf16.xpose.msra.mxu0 0
    %145 = vmatprep.subr.bf16.mxu0 0
    %146 = vmatpush2.bf16.xpose.msra.mxu0 0
    %147 = vmatprep.mubr.bf16.mxu0 0
    %148 = vmatmul.mubr.bf16.gmra.mxu0 %v86
    %v149 = vpop.f32.mrf.mxu0
    %v150 = vadd.f32 %v57, %v149
    %v151 = vpop.f32.mrf.mxu0
    %v152 = vpop.f32.mrf.mxu0
    %v153 = vadd.f32 %v62, %v152
    %v154 = vpop.f32.mrf.mxu0
    %155 = vmatprep.mubr.bf16.mxu0 0
    %156 = vmatmul.mubr.bf16.gmra.mxu0 %v89
    %v157 = vpop.f32.mrf.mxu0
    %v158 = vadd.f32 %v67, %v157
    %v159 = vpop.f32.mrf.mxu0
    %v160 = vpop.f32.mrf.mxu0
    %v161 = vadd.f32 %v72, %v160
    %v162 = vpop.f32.mrf.mxu0
    %163 = vdwg.mxu0
    %v164 = vmul.f32 %v150, 0.5
    %v165 = vmul.f32 %v153, 0.5
    %v166 = vmul.f32 %v158, 0.5
    %v167 = vmul.f32 %v161, 0.5
    %v168 = vmul.f32 %v150, 0.70710677
    %v169 = vmul.f32 %v153, 0.70710677
    %v170 = vmul.f32 %v158, 0.70710677
    %v171 = vmul.f32 %v161, 0.70710677
    %v172 = verf.f32.pop %v168
    %v173 = verf.f32.pop %v169
    %v174 = verf.f32.pop %v170
    %v175 = verf.f32.pop %v171
    %v176 = vadd.f32 %v172, 1.0
    %v177 = vadd.f32 %v173, 1.0
    %v178 = vadd.f32 %v174, 1.0
    %v179 = vadd.f32 %v175, 1.0
    %v180 = vmul.f32 %v164, %v176
    %v181 = vmul.f32 %v165, %v177
    %v182 = vmul.f32 %v166, %v178
    %v183 = vmul.f32 %v167, %v179
    %v184 = vld [vmem:[%s3] sm:$0xf]
    %v185 = vld [vmem:[%s3 + $0x4] sm:$0xf]
    %v186 = vpack.c.bf16 %v181, %v180
    %v187 = vpack.c.bf16 %v183, %v182
    %v188 = vld [vmem:[%s4] sm:$0xff]
    %v189 = vld [vmem:[%s4 + $0x8] sm:$0xff]
    %191 = vset.pattern.permute.xlu0 0
    %192 = vperm.xlu0 %191, %v188
    %v193 = vpop.permute.xlu0 %192
    %196 = vset.pattern.permute.xlu0 0
    %197 = vperm.xlu0 %196, %v189
    %v198 = vpop.permute.xlu0 %197
    %v202 = vunpack.c.l.b16 %v184
    %v203 = vunpack.c.l.b16 %v185
    %v204 = vpack.c.b16 %v203, %v202
    %vm205 = vcmask 261120
    %v207 = vsel %vm205, %v204, 0
    %209 = vmatprep.subr.bf16.mxu0 0
    %210 = vmatpush1.bf16.msra.mxu0 0
    %211 = vmatprep.subr.bf16.mxu0 0
    %212 = vmatpush1.bf16.msra.mxu0 0
    %213 = vmatprep.subr.bf16.mxu0 0
    %214 = vmatpush1.bf16.msra.mxu0 0
    %215 = vmatprep.subr.bf16.mxu0 0
    %216 = vmatpush1.bf16.msra.mxu0 0
    %217 = vmatprep.subr.bf16.mxu0 0
    %218 = vmatpush1.bf16.msra.mxu0 0
    %219 = vmatprep.subr.bf16.mxu0 0
    %220 = vmatpush1.bf16.msra.mxu0 0
    %221 = vmatprep.subr.bf16.mxu0 0
    %222 = vmatpush1.bf16.msra.mxu0 %v187
    %223 = vmatprep.subr.bf16.mxu0 0
    %224 = vmatpush1.bf16.msra.mxu0 %v186
    %225 = vmatprep.subr.bf16.mxu0 0
    %226 = vmatpush2.bf16.msra.mxu0 0
    %227 = vmatprep.subr.bf16.mxu0 0
    %228 = vmatpush2.bf16.msra.mxu0 0
    %229 = vmatprep.subr.bf16.mxu0 0
    %230 = vmatpush2.bf16.msra.mxu0 0
    %231 = vmatprep.subr.bf16.mxu0 0
    %232 = vmatpush2.bf16.msra.mxu0 0
    %233 = vmatprep.subr.bf16.mxu0 0
    %234 = vmatpush2.bf16.msra.mxu0 0
    %235 = vmatprep.subr.bf16.mxu0 0
    %236 = vmatpush2.bf16.msra.mxu0 0
    %237 = vmatprep.subr.bf16.mxu0 0
    %238 = vmatpush2.bf16.msra.mxu0 0
    %239 = vmatprep.subr.bf16.mxu0 0
    %240 = vmatpush2.bf16.msra.mxu0 0
    %241 = vmatprep.mubr.bf16.mxu0 0
    %242 = vmatmul.mubr.bf16.gmra.mxu0 %v207
    %v243 = vpop.f32.mrf.mxu0
    %v244 = vadd.f32 %v193, %v243
    %v245 = vpop.f32.mrf.mxu0
    %v246 = vpop.f32.mrf.mxu0
    %v247 = vadd.f32 %v198, %v246
    %v248 = vpop.f32.mrf.mxu0
    %249 = vdwg.mxu0
    %250 = vst [vmem:[#allocation2] sm:$0xff] %v244
    %251 = vst [vmem:[#allocation2 + $0x8] sm:$0xff] %v247
    // Predicated region
    $region22: #{tpu_custom_call.1} parent=1 // pred_check
      _
    $region23: #{tpu_custom_call.1} parent=1 // pred_check_branch
      %253 = sbr.rel (0) target = $region25
    $region24: #{tpu_custom_call.1} parent=1 // pred_region
      %s255 = ssub.s32 256, 256
      %256 = vsyncadd [#allocation3], %s255
      %s257 = sshll.u32 [#allocation2], 4
      %s258 = int_to_ptr.vmem [resolvable:$true] %s257
      %263 = dma.vmem_to_hbm [thread:$0]  %s258, 256, %s5, [#allocation3], 128, 128, 8
    $region25: #{tpu_custom_call.1} parent=1 // pred_fallthru
      _
    // Predicated region
    $region26: #{tpu_custom_call.1} parent=1 // pred_check
      _
    $region27: #{tpu_custom_call.1} parent=1 // pred_check_branch
      %265 = sbr.rel (0) target = $region29
    $region28: #{tpu_custom_call.1} parent=1 // pred_region
      %266 = dma.done [#allocation3], 256
    $region29: #{tpu_custom_call.1} parent=1 // pred_fallthru
      _
    %267 = vsyncpa [#allocation3], 1

</llo_original>
